<compile_context>
chip_gen: v7x
topology: tpu7x:2x2x1
jax: 0.10.0
libtpu: 0.0.40
codegen_flags: <defaults>
</compile_context>

<pallas_src>
from functools import partial

import jax
import jax.numpy as jnp
from jax.experimental import pallas as pl
from jax.experimental.pallas import tpu as pltpu


def _round_up(x, m):
    return ((x + m - 1) // m) * m


def _layer_norm_rows(x, gamma, beta, n_valid, eps=1e-5):
    """LayerNorm over the last dim of an [R, Dp] slab whose lanes >= n_valid are 0.

    Uses the true feature count n_valid as the divisor (one-pass variance), so
    zero-padding the feature dim is exact; padded lanes are killed by gamma==0.
    """
    inv_n = 1.0 / n_valid
    mean = jnp.sum(x, axis=-1, keepdims=True) * inv_n
    ex2 = jnp.sum(x * x, axis=-1, keepdims=True) * inv_n
    var = jnp.maximum(ex2 - mean * mean, 0.0)
    return (x - mean) * jax.lax.rsqrt(var + eps) * gamma + beta


def _forward_body(q_ref, k_ref, v_ref, g_ref, be_ref, w_ref, wb_ref,
                  band_ref, o_ref, kv_scr, *, cache_len, sup, tq, din):
    qi = pl.program_id(1)
    bt, lk, dout_p = kv_scr.shape
    din_p = q_ref.shape[-1]

    g_all = g_ref[...]        # (3, din_p)  rows = [q, k, v] gammas
    b_all = be_ref[...]       # (3, din_p)  betas
    wb_all = wb_ref[...]      # (3, dout_p) projection biases

    def ln(x2d, idx):
        return _layer_norm_rows(x2d, g_all[idx:idx + 1, :], b_all[idx:idx + 1, :], din)

    # ---- kv = relu(Wk ln(k)) * Wv ln(v): once per batch tile, kept in VMEM ----
    @pl.when(qi == 0)
    def _compute_kv():
        k2 = k_ref[...].reshape(bt * lk, din_p)
        v2 = v_ref[...].reshape(bt * lk, din_p)
        kn = ln(k2, 1).astype(jnp.bfloat16)
        vn = ln(v2, 2).astype(jnp.bfloat16)
        kp = jnp.dot(kn, w_ref[1], preferred_element_type=jnp.float32) + wb_all[1:2, :]
        vp = jnp.dot(vn, w_ref[2], preferred_element_type=jnp.float32) + wb_all[2:3, :]
        kv = jnp.maximum(kp, 0.0) * vp
        kv_scr[...] = kv.reshape(bt, lk, dout_p)

    # ---- q path for this Lq tile ----
    q2 = q_ref[...].reshape(bt * tq, din_p)
    qn = ln(q2, 0).astype(jnp.bfloat16)
    qp = jnp.dot(qn, w_ref[0], preferred_element_type=jnp.float32) + wb_all[0:1, :]
    q_act = jnp.maximum(qp, 0.0).reshape(bt, tq, dout_p)

    # ---- sliding-window sum of kv over the keys this tile touches ----
    win = tq + cache_len - 1
    start = qi * tq + sup                       # first key of this tile's window
    kv_win = kv_scr[:, pl.ds(start, win), :]    # (bt, win, dout_p)

    if band_ref is None:
        # Small window: cache_len shifted adds (VPU) -- no band, no matmul.
        weighted = kv_win[:, 0:tq, :]
        for c in range(1, cache_len):
            weighted = weighted + kv_win[:, c:c + tq, :]
    else:
        # Large window: tiny block-banded MXU matmul (band is exact in bf16),
        # instead of the dense (Lq, Lk) band of the original formulation.
        band = band_ref[...]                    # (tq, win) bf16
        parts = []
        for b in range(bt):
            parts.append(jnp.dot(band, kv_win[b].astype(jnp.bfloat16),
                                 preferred_element_type=jnp.float32))
        weighted = jnp.stack(parts, axis=0)

    o_ref[...] = q_act * weighted


def _kernel_add(q_ref, k_ref, v_ref, g_ref, be_ref, w_ref, wb_ref,
                o_ref, kv_scr, **statics):
    _forward_body(q_ref, k_ref, v_ref, g_ref, be_ref, w_ref, wb_ref,
                  None, o_ref, kv_scr, **statics)


def _kernel_band(q_ref, k_ref, v_ref, g_ref, be_ref, w_ref, wb_ref,
                 band_ref, o_ref, kv_scr, **statics):
    _forward_body(q_ref, k_ref, v_ref, g_ref, be_ref, w_ref, wb_ref,
                  band_ref, o_ref, kv_scr, **statics)


def add_transformer(q, k, v, params, cache_len, *, bt=None, tq=None,
                    add_window_max=32):
    """Pallas forward of add_transformer.  q: [B,Lq,Din], k/v: [B,Lk,Din]."""
    B, Lq, Din = q.shape
    _, Lk, _ = k.shape
    Dout = params["wq"].shape[1]
    sup = Lk - Lq - cache_len + 1
    assert sup >= 0, "need Lk >= Lq + cache_len - 1 (same assert as integrate3)"

    # ---- tile sizes --------------------------------------------------------
    if tq is None:                             # Lq tile (second grid axis)
        tq = Lq
        if Lq > 256:
            for cand in (256, 128, 64, 32, 16, 8):
                if Lq % cand == 0:
                    tq = cand
                    break
    assert Lq % tq == 0 and (tq == Lq or tq % 8 == 0)

    if bt is None:                             # batch elements per grid step
        bt = 1
        if B > 1 and Lq % 8 == 0 and Lk % 8 == 0 and tq % 8 == 0:
            for cand in range(B, 0, -1):
                if B % cand != 0:
                    continue
                if cand * max(Lq, Lk) > 2048:      # keep VMEM blocks modest
                    continue
                if (B // cand) < min(2, B):        # >=2 steps for megacore
                    continue
                bt = cand
                break
    assert B % bt == 0
    if bt > 1:
        assert Lq % 8 == 0 and Lk % 8 == 0 and tq % 8 == 0

    # ---- lane-dense zero padding of the feature dims -----------------------
    din_p = _round_up(Din, 128)
    dout_p = _round_up(Dout, 128)

    def pad_last(x, new):
        if x.shape[-1] == new:
            return x
        widths = [(0, 0)] * (x.ndim - 1) + [(0, new - x.shape[-1])]
        return jnp.pad(x, widths)

    qf = pad_last(q.astype(jnp.float32), din_p)
    kf = pad_last(k.astype(jnp.float32), din_p)
    vf = pad_last(v.astype(jnp.float32), din_p)

    gam = pad_last(jnp.stack([params["gq"].reshape(-1),
                              params["gk"].reshape(-1),
                              params["gv"].reshape(-1)]).astype(jnp.float32), din_p)
    bet = pad_last(jnp.stack([params["bq"].reshape(-1),
                              params["bk"].reshape(-1),
                              params["bv"].reshape(-1)]).astype(jnp.float32), din_p)
    w = jnp.stack([params["wq"], params["wk"], params["wv"]]).astype(jnp.float32)
    w = jnp.pad(w, ((0, 0), (0, din_p - Din), (0, dout_p - Dout))).astype(jnp.bfloat16)
    wb = pad_last(jnp.stack([params["bwq"].reshape(-1),
                             params["bwk"].reshape(-1),
                             params["bwv"].reshape(-1)]).astype(jnp.float32), dout_p)

    nb, nq = B // bt, Lq // tq
    use_band = cache_len > add_window_max
    win = tq + cache_len - 1
    statics = dict(cache_len=cache_len, sup=sup, tq=tq, din=Din)

    # TODO(synk): for very long Lk, additionally tile the key axis (second
    # stage pipeline over kv) so the k/v blocks and kv scratch are not
    # whole-sequence (matters for v5e 16 MiB / v7x 32 MiB scoped VMEM).
    in_specs = [
        pl.BlockSpec((bt, tq, din_p), lambda b, qi: (b, qi, 0)),    # q tile
        pl.BlockSpec((bt, Lk, din_p), lambda b, qi: (b, 0, 0)),     # k (resident over qi)
        pl.BlockSpec((bt, Lk, din_p), lambda b, qi: (b, 0, 0)),     # v (resident over qi)
        pl.BlockSpec((3, din_p), lambda b, qi: (0, 0)),             # LN gammas (stacked)
        pl.BlockSpec((3, din_p), lambda b, qi: (0, 0)),             # LN betas (stacked)
        pl.BlockSpec((3, din_p, dout_p), lambda b, qi: (0, 0, 0)),  # Wq|Wk|Wv (bf16)
        pl.BlockSpec((3, dout_p), lambda b, qi: (0, 0)),            # projection biases
    ]
    args = [qf, kf, vf, gam, bet, w, wb]
    if use_band:
        i = jnp.arange(tq)[:, None]
        j = jnp.arange(win)[None, :]
        band = ((j - i >= 0) & (j - i < cache_len)).astype(jnp.bfloat16)
        in_specs.append(pl.BlockSpec((tq, win), lambda b, qi: (0, 0)))
        args.append(band)
        kernel = partial(_kernel_band, **statics)
    else:
        kernel = partial(_kernel_add, **statics)

    out_spec = pl.BlockSpec((bt, tq, dout_p), lambda b, qi: (b, qi, 0))

    # ---- scoped-VMEM budget: double-buffered blocks + resident scratch ------
    f32b, bf16b = 4, 2
    block_bytes = (
        2 * bt * tq * din_p * f32b            # q blocks (double buffered)
        + 2 * 2 * bt * Lk * din_p * f32b      # k, v blocks
        + 2 * bt * tq * dout_p * f32b         # output blocks
        + 2 * (2 * 3 * din_p * f32b + 3 * din_p * dout_p * bf16b + 3 * dout_p * f32b)
        + bt * Lk * dout_p * f32b             # kv scratch
        + (tq * win * bf16b if use_band else 0)
    )
    vmem_limit = int(min(max(2 * block_bytes + (8 << 20), 32 << 20), 100 << 20))

    out = pl.pallas_call(
        kernel,
        out_shape=jax.ShapeDtypeStruct((B, Lq, dout_p), jnp.float32),
        grid_spec=pltpu.PrefetchScalarGridSpec(
            num_scalar_prefetch=0,
            grid=(nb, nq),
            in_specs=in_specs,
            out_specs=out_spec,
            scratch_shapes=[pltpu.VMEM((bt, Lk, dout_p), jnp.float32)],
        ),
        compiler_params=pltpu.CompilerParams(
            dimension_semantics=("parallel", "arbitrary"),
            vmem_limit_bytes=vmem_limit,
        ),
    )(*args)

    return out if dout_p == Dout else out[..., :Dout]


# ----------------------------- pure-JAX references -----------------------------

def _ln_ref(x, gamma, beta, eps=1e-5):
    mean = jnp.mean(x, axis=-1, keepdims=True)
    var = jnp.mean((x - mean) ** 2, axis=-1, keepdims=True)
    return (x - mean) * jax.lax.rsqrt(var + eps) * gamma + beta


def reference(q, k, v, params, cache_len, *, bf16_matmul=False):
    """Pure-JAX reference of the PyTorch forward.

    bf16_matmul=True mirrors the kernel's MXU numerics (bf16 operands, f32
    accumulate) for a tight structural check; False is the plain f32 module.
    """
    def proj(x, g, b, w, wb):
        xn = _ln_ref(x, g, b)
        if bf16_matmul:
            return jnp.dot(xn.astype(jnp.bfloat16), w.astype(jnp.bfloat16),
                           preferred_element_type=jnp.float32) + wb
        return jnp.dot(xn, w, precision=jax.lax.Precision.HIGHEST) + wb

    qp = proj(q, params["gq"], params["bq"], params["wq"], params["bwq"])
    kp = proj(k, params["gk"], params["bk"], params["wk"], params["bwk"])
    vp = proj(v, params["gv"], params["bv"], params["wv"], params["bwv"])
    kv = jnp.maximum(kp, 0.0) * vp
    Lq, Lk = qp.shape[1], kv.shape[1]
    sup = Lk - Lq - cache_len + 1
    # Sliding-window sum == einsum('bkd,bqk->bqd', kv, band) in exact f32.
    weighted = kv[:, sup:sup + Lq, :]
    for c in range(1, cache_len):
        weighted = weighted + kv[:, sup + c:sup + c + Lq, :]
    return jnp.maximum(qp, 0.0) * weighted


if __name__ == "__main__":
    B, Lq, Lk = 4, 8, 16
    in_dim, out_dim, cache_len = 32, 32, 4     # sup = 16 - 8 - 4 + 1 = 5 >= 0

    key = jax.random.PRNGKey(0)
    keys = jax.random.split(key, 9)

    q = jax.random.normal(keys[0], (B, Lq, in_dim), dtype=jnp.float32)
    k = jax.random.normal(keys[1], (B, Lk, in_dim), dtype=jnp.float32)
    v = jax.random.normal(keys[2], (B, Lk, in_dim), dtype=jnp.float32)

    def init_linear(kk, din, dout):
        lim = 1.0 / jnp.sqrt(din)
        k1, k2 = jax.random.split(kk)
        wgt = jax.random.uniform(k1, (din, dout), jnp.float32, -lim, lim)
        bia = jax.random.uniform(k2, (1, dout), jnp.float32, -lim, lim)
        return wgt, bia

    def ln_params(kk, d):
        k1, k2 = jax.random.split(kk)
        g = 1.0 + 0.1 * jax.random.normal(k1, (1, d), jnp.float32)
        b = 0.1 * jax.random.normal(k2, (1, d), jnp.float32)
        return g, b

    wq, bwq = init_linear(keys[3], in_dim, out_dim)
    wk, bwk = init_linear(keys[4], in_dim, out_dim)
    wv, bwv = init_linear(keys[5], in_dim, out_dim)
    gq, bq = ln_params(keys[6], in_dim)
    gk, bk = ln_params(keys[7], in_dim)
    gv, bv = ln_params(keys[8], in_dim)

    params = dict(gq=gq, bq=bq, gk=gk, bk=bk, gv=gv, bv=bv,
                  wq=wq, bwq=bwq, wk=wk, bwk=bwk, wv=wv, bwv=bwv)

    out = add_transformer(q, k, v, params, cache_len)
    out = jax.block_until_ready(out)
    assert out.shape == (B, Lq, out_dim)

    # Tight structural check against a reference with matching MXU numerics.
    ref_tight = reference(q, k, v, params, cache_len, bf16_matmul=True)
    assert jnp.allclose(out, ref_tight, atol=5e-3, rtol=5e-3), \
        "mismatch vs bf16-matched JAX reference"

    # Loose check against the exact-f32 module semantics (bf16 MXU operands).
    ref_f32 = reference(q, k, v, params, cache_len, bf16_matmul=False)
    assert jnp.allclose(out, ref_f32, atol=1e-1, rtol=5e-2), \
        "mismatch vs f32 JAX reference"

    print("KERNEL_OK")
</pallas_src>

<mosaic_0001>
module attributes {stable_mosaic.version = 11 : i64} {
  func.func @_kernel_add(%arg0: i32, %arg1: i32, %arg2: memref<2x8x128xf32, #tpu.memory_space<vmem>>, %arg3: memref<2x16x128xf32, #tpu.memory_space<vmem>>, %arg4: memref<2x16x128xf32, #tpu.memory_space<vmem>>, %arg5: memref<3x128xf32, #tpu.memory_space<vmem>>, %arg6: memref<3x128xf32, #tpu.memory_space<vmem>>, %arg7: memref<3x128x128xbf16, #tpu.memory_space<vmem>>, %arg8: memref<3x128xf32, #tpu.memory_space<vmem>>, %arg9: memref<2x8x128xf32, #tpu.memory_space<vmem>>, %arg10: memref<2x16x128xf32, #tpu.memory_space<vmem>>) attributes {dimension_semantics = [#tpu.dimension_semantics<parallel>, #tpu.dimension_semantics<arbitrary>], iteration_bounds = array<i64: 2, 1>, scalar_prefetch = 0 : i64, scratch_operands = 1 : i64, tpu.core_type = #tpu.core_type<tc>, window_params = [{transform_indices = @transform_0, window_bounds = array<i64: 2, 8, 128>}, {transform_indices = @transform_1, window_bounds = array<i64: 2, 16, 128>}, {transform_indices = @transform_2, window_bounds = array<i64: 2, 16, 128>}, {pipeline_mode = #tpu.pipeline_mode<synchronous>, transform_indices = @transform_3, window_bounds = array<i64: 3, 128>}, {pipeline_mode = #tpu.pipeline_mode<synchronous>, transform_indices = @transform_4, window_bounds = array<i64: 3, 128>}, {pipeline_mode = #tpu.pipeline_mode<synchronous>, transform_indices = @transform_5, window_bounds = array<i64: 3, 128, 128>}, {pipeline_mode = #tpu.pipeline_mode<synchronous>, transform_indices = @transform_6, window_bounds = array<i64: 3, 128>}, {transform_indices = @transform_7, window_bounds = array<i64: 2, 8, 128>}]} {
    %c0 = arith.constant 0 : index
    %c0_0 = arith.constant 0 : index
    %0 = vector.load %arg5[%c0, %c0_0] : memref<3x128xf32, #tpu.memory_space<vmem>>, vector<3x128xf32>
    %c0_1 = arith.constant 0 : index
    %c0_2 = arith.constant 0 : index
    %1 = vector.load %arg6[%c0_1, %c0_2] : memref<3x128xf32, #tpu.memory_space<vmem>>, vector<3x128xf32>
    %c0_3 = arith.constant 0 : index
    %c0_4 = arith.constant 0 : index
    %2 = vector.load %arg8[%c0_3, %c0_4] : memref<3x128xf32, #tpu.memory_space<vmem>>, vector<3x128xf32>
    %c0_i32 = arith.constant 0 : i32
    %3 = arith.cmpi eq, %arg1, %c0_i32 : i32
    %4 = arith.extui %3 : i1 to i32
    %c0_i32_5 = arith.constant 0 : i32
    %5 = arith.cmpi ne, %4, %c0_i32_5 : i32
    scf.if %5 {
      %c0_24 = arith.constant 0 : index
      %c0_25 = arith.constant 0 : index
      %c0_26 = arith.constant 0 : index
      %57 = vector.load %arg3[%c0_24, %c0_25, %c0_26] : memref<2x16x128xf32, #tpu.memory_space<vmem>>, vector<2x16x128xf32>
      %58 = vector.shape_cast %57 : vector<2x16x128xf32> to vector<32x128xf32>
      %c0_27 = arith.constant 0 : index
      %c0_28 = arith.constant 0 : index
      %c0_29 = arith.constant 0 : index
      %59 = vector.load %arg4[%c0_27, %c0_28, %c0_29] : memref<2x16x128xf32, #tpu.memory_space<vmem>>, vector<2x16x128xf32>
      %60 = vector.shape_cast %59 : vector<2x16x128xf32> to vector<32x128xf32>
      %61 = vector.extract_strided_slice %0 {offsets = [1, 0], sizes = [1, 128], strides = [1, 1]} : vector<3x128xf32> to vector<1x128xf32>
      %62 = vector.extract_strided_slice %1 {offsets = [1, 0], sizes = [1, 128], strides = [1, 1]} : vector<3x128xf32> to vector<1x128xf32>
      %cst_30 = arith.constant dense<0.000000e+00> : vector<32xf32>
      %63 = vector.multi_reduction <add>, %58, %cst_30 [1] : vector<32x128xf32> to vector<32xf32>
      %64 = vector.shape_cast %63 : vector<32xf32> to vector<32x1xf32>
      %cst_31 = arith.constant 3.125000e-02 : f32
      %65 = vector.broadcast %cst_31 : f32 to vector<32x1xf32>
      %66 = arith.mulf %64, %65 : vector<32x1xf32>
      %67 = arith.mulf %58, %58 : vector<32x128xf32>
      %cst_32 = arith.constant dense<0.000000e+00> : vector<32xf32>
      %68 = vector.multi_reduction <add>, %67, %cst_32 [1] : vector<32x128xf32> to vector<32xf32>
      %69 = vector.shape_cast %68 : vector<32xf32> to vector<32x1xf32>
      %cst_33 = arith.constant 3.125000e-02 : f32
      %70 = vector.broadcast %cst_33 : f32 to vector<32x1xf32>
      %71 = arith.mulf %69, %70 : vector<32x1xf32>
      %72 = arith.mulf %66, %66 : vector<32x1xf32>
      %73 = arith.subf %71, %72 : vector<32x1xf32>
      %cst_34 = arith.constant 0.000000e+00 : f32
      %74 = vector.broadcast %cst_34 : f32 to vector<32x1xf32>
      %75 = arith.maximumf %73, %74 : vector<32x1xf32>
      %76 = vector.broadcast %66 : vector<32x1xf32> to vector<32x128xf32>
      %77 = arith.subf %58, %76 : vector<32x128xf32>
      %cst_35 = arith.constant 9.99999974E-6 : f32
      %78 = vector.broadcast %cst_35 : f32 to vector<32x1xf32>
      %79 = arith.addf %75, %78 : vector<32x1xf32>
      %80 = math.rsqrt %79 : vector<32x1xf32>
      %81 = vector.broadcast %80 : vector<32x1xf32> to vector<32x128xf32>
      %82 = arith.mulf %77, %81 : vector<32x128xf32>
      %83 = vector.broadcast %61 : vector<1x128xf32> to vector<32x128xf32>
      %84 = arith.mulf %82, %83 : vector<32x128xf32>
      %85 = vector.broadcast %62 : vector<1x128xf32> to vector<32x128xf32>
      %86 = arith.addf %84, %85 : vector<32x128xf32>
      %87 = arith.truncf %86 : vector<32x128xf32> to vector<32x128xbf16>
      %88 = vector.extract_strided_slice %0 {offsets = [2, 0], sizes = [1, 128], strides = [1, 1]} : vector<3x128xf32> to vector<1x128xf32>
      %89 = vector.extract_strided_slice %1 {offsets = [2, 0], sizes = [1, 128], strides = [1, 1]} : vector<3x128xf32> to vector<1x128xf32>
      %cst_36 = arith.constant dense<0.000000e+00> : vector<32xf32>
      %90 = vector.multi_reduction <add>, %60, %cst_36 [1] : vector<32x128xf32> to vector<32xf32>
      %91 = vector.shape_cast %90 : vector<32xf32> to vector<32x1xf32>
      %cst_37 = arith.constant 3.125000e-02 : f32
      %92 = vector.broadcast %cst_37 : f32 to vector<32x1xf32>
      %93 = arith.mulf %91, %92 : vector<32x1xf32>
      %94 = arith.mulf %60, %60 : vector<32x128xf32>
      %cst_38 = arith.constant dense<0.000000e+00> : vector<32xf32>
      %95 = vector.multi_reduction <add>, %94, %cst_38 [1] : vector<32x128xf32> to vector<32xf32>
      %96 = vector.shape_cast %95 : vector<32xf32> to vector<32x1xf32>
      %cst_39 = arith.constant 3.125000e-02 : f32
      %97 = vector.broadcast %cst_39 : f32 to vector<32x1xf32>
      %98 = arith.mulf %96, %97 : vector<32x1xf32>
      %99 = arith.mulf %93, %93 : vector<32x1xf32>
      %100 = arith.subf %98, %99 : vector<32x1xf32>
      %cst_40 = arith.constant 0.000000e+00 : f32
      %101 = vector.broadcast %cst_40 : f32 to vector<32x1xf32>
      %102 = arith.maximumf %100, %101 : vector<32x1xf32>
      %103 = vector.broadcast %93 : vector<32x1xf32> to vector<32x128xf32>
      %104 = arith.subf %60, %103 : vector<32x128xf32>
      %cst_41 = arith.constant 9.99999974E-6 : f32
      %105 = vector.broadcast %cst_41 : f32 to vector<32x1xf32>
      %106 = arith.addf %102, %105 : vector<32x1xf32>
      %107 = math.rsqrt %106 : vector<32x1xf32>
      %108 = vector.broadcast %107 : vector<32x1xf32> to vector<32x128xf32>
      %109 = arith.mulf %104, %108 : vector<32x128xf32>
      %110 = vector.broadcast %88 : vector<1x128xf32> to vector<32x128xf32>
      %111 = arith.mulf %109, %110 : vector<32x128xf32>
      %112 = vector.broadcast %89 : vector<1x128xf32> to vector<32x128xf32>
      %113 = arith.addf %111, %112 : vector<32x128xf32>
      %114 = arith.truncf %113 : vector<32x128xf32> to vector<32x128xbf16>
      %c1 = arith.constant 1 : index
      %c0_42 = arith.constant 0 : index
      %c0_43 = arith.constant 0 : index
      %115 = vector.load %arg7[%c1, %c0_42, %c0_43] : memref<3x128x128xbf16, #tpu.memory_space<vmem>>, vector<1x128x128xbf16>
      %116 = vector.shape_cast %115 : vector<1x128x128xbf16> to vector<128x128xbf16>
      %cst_44 = arith.constant dense<0.000000e+00> : vector<32x128xf32>
      %117 = tpu.matmul %87, %116, %cst_44 {dimension_numbers = #tpu.dot_dimension_numbers<[1], [0], [0], [1], [0, 0, 1, 1], [], []>} : vector<32x128xbf16>, vector<128x128xbf16>, vector<32x128xf32> -> vector<32x128xf32>
      %118 = vector.extract_strided_slice %2 {offsets = [1, 0], sizes = [1, 128], strides = [1, 1]} : vector<3x128xf32> to vector<1x128xf32>
      %119 = vector.broadcast %118 : vector<1x128xf32> to vector<32x128xf32>
      %120 = arith.addf %117, %119 : vector<32x128xf32>
      %c2 = arith.constant 2 : index
      %c0_45 = arith.constant 0 : index
      %c0_46 = arith.constant 0 : index
      %121 = vector.load %arg7[%c2, %c0_45, %c0_46] : memref<3x128x128xbf16, #tpu.memory_space<vmem>>, vector<1x128x128xbf16>
      %122 = vector.shape_cast %121 : vector<1x128x128xbf16> to vector<128x128xbf16>
      %cst_47 = arith.constant dense<0.000000e+00> : vector<32x128xf32>
      %123 = tpu.matmul %114, %122, %cst_47 {dimension_numbers = #tpu.dot_dimension_numbers<[1], [0], [0], [1], [0, 0, 1, 1], [], []>} : vector<32x128xbf16>, vector<128x128xbf16>, vector<32x128xf32> -> vector<32x128xf32>
      %124 = vector.extract_strided_slice %2 {offsets = [2, 0], sizes = [1, 128], strides = [1, 1]} : vector<3x128xf32> to vector<1x128xf32>
      %125 = vector.broadcast %124 : vector<1x128xf32> to vector<32x128xf32>
      %126 = arith.addf %123, %125 : vector<32x128xf32>
      %cst_48 = arith.constant 0.000000e+00 : f32
      %127 = vector.broadcast %cst_48 : f32 to vector<32x128xf32>
      %128 = arith.maximumf %120, %127 : vector<32x128xf32>
      %129 = arith.mulf %128, %126 : vector<32x128xf32>
      %130 = vector.shape_cast %129 : vector<32x128xf32> to vector<2x16x128xf32>
      %c0_49 = arith.constant 0 : index
      %c0_50 = arith.constant 0 : index
      %c0_51 = arith.constant 0 : index
      %131 = vector.load %arg10[%c0_49, %c0_50, %c0_51] : memref<2x16x128xf32, #tpu.memory_space<vmem>>, vector<2x16x128xf32>
      tpu.vector_store %arg10[%c0_49, %c0_50, %c0_51], %130 {strides = array<i32>} : memref<2x16x128xf32, #tpu.memory_space<vmem>>, vector<2x16x128xf32>,
    } else {
    }
    %c0_6 = arith.constant 0 : index
    %c0_7 = arith.constant 0 : index
    %c0_8 = arith.constant 0 : index
    %6 = vector.load %arg2[%c0_6, %c0_7, %c0_8] : memref<2x8x128xf32, #tpu.memory_space<vmem>>, vector<2x8x128xf32>
    %7 = vector.shape_cast %6 : vector<2x8x128xf32> to vector<16x128xf32>
    %8 = vector.extract_strided_slice %0 {offsets = [0, 0], sizes = [1, 128], strides = [1, 1]} : vector<3x128xf32> to vector<1x128xf32>
    %9 = vector.extract_strided_slice %1 {offsets = [0, 0], sizes = [1, 128], strides = [1, 1]} : vector<3x128xf32> to vector<1x128xf32>
    %cst = arith.constant dense<0.000000e+00> : vector<16xf32>
    %10 = vector.multi_reduction <add>, %7, %cst [1] : vector<16x128xf32> to vector<16xf32>
    %11 = vector.shape_cast %10 : vector<16xf32> to vector<16x1xf32>
    %cst_9 = arith.constant 3.125000e-02 : f32
    %12 = vector.broadcast %cst_9 : f32 to vector<16x1xf32>
    %13 = arith.mulf %11, %12 : vector<16x1xf32>
    %14 = arith.mulf %7, %7 : vector<16x128xf32>
    %cst_10 = arith.constant dense<0.000000e+00> : vector<16xf32>
    %15 = vector.multi_reduction <add>, %14, %cst_10 [1] : vector<16x128xf32> to vector<16xf32>
    %16 = vector.shape_cast %15 : vector<16xf32> to vector<16x1xf32>
    %cst_11 = arith.constant 3.125000e-02 : f32
    %17 = vector.broadcast %cst_11 : f32 to vector<16x1xf32>
    %18 = arith.mulf %16, %17 : vector<16x1xf32>
    %19 = arith.mulf %13, %13 : vector<16x1xf32>
    %20 = arith.subf %18, %19 : vector<16x1xf32>
    %cst_12 = arith.constant 0.000000e+00 : f32
    %21 = vector.broadcast %cst_12 : f32 to vector<16x1xf32>
    %22 = arith.maximumf %20, %21 : vector<16x1xf32>
    %23 = vector.broadcast %13 : vector<16x1xf32> to vector<16x128xf32>
    %24 = arith.subf %7, %23 : vector<16x128xf32>
    %cst_13 = arith.constant 9.99999974E-6 : f32
    %25 = vector.broadcast %cst_13 : f32 to vector<16x1xf32>
    %26 = arith.addf %22, %25 : vector<16x1xf32>
    %27 = math.rsqrt %26 : vector<16x1xf32>
    %28 = vector.broadcast %27 : vector<16x1xf32> to vector<16x128xf32>
    %29 = arith.mulf %24, %28 : vector<16x128xf32>
    %30 = vector.broadcast %8 : vector<1x128xf32> to vector<16x128xf32>
    %31 = arith.mulf %29, %30 : vector<16x128xf32>
    %32 = vector.broadcast %9 : vector<1x128xf32> to vector<16x128xf32>
    %33 = arith.addf %31, %32 : vector<16x128xf32>
    %34 = arith.truncf %33 : vector<16x128xf32> to vector<16x128xbf16>
    %c0_14 = arith.constant 0 : index
    %c0_15 = arith.constant 0 : index
    %c0_16 = arith.constant 0 : index
    %35 = vector.load %arg7[%c0_14, %c0_15, %c0_16] : memref<3x128x128xbf16, #tpu.memory_space<vmem>>, vector<1x128x128xbf16>
    %36 = vector.shape_cast %35 : vector<1x128x128xbf16> to vector<128x128xbf16>
    %cst_17 = arith.constant dense<0.000000e+00> : vector<16x128xf32>
    %37 = tpu.matmul %34, %36, %cst_17 {dimension_numbers = #tpu.dot_dimension_numbers<[1], [0], [0], [1], [0, 0, 1, 1], [], []>} : vector<16x128xbf16>, vector<128x128xbf16>, vector<16x128xf32> -> vector<16x128xf32>
    %38 = vector.extract_strided_slice %2 {offsets = [0, 0], sizes = [1, 128], strides = [1, 1]} : vector<3x128xf32> to vector<1x128xf32>
    %39 = vector.broadcast %38 : vector<1x128xf32> to vector<16x128xf32>
    %40 = arith.addf %37, %39 : vector<16x128xf32>
    %cst_18 = arith.constant 0.000000e+00 : f32
    %41 = vector.broadcast %cst_18 : f32 to vector<16x128xf32>
    %42 = arith.maximumf %40, %41 : vector<16x128xf32>
    %43 = vector.shape_cast %42 : vector<16x128xf32> to vector<2x8x128xf32>
    %c8_i32 = arith.constant 8 : i32
    %44 = arith.muli %arg1, %c8_i32 : i32
    %c5_i32 = arith.constant 5 : i32
    %45 = arith.addi %44, %c5_i32 : i32
    %c0_19 = arith.constant 0 : index
    %46 = arith.index_cast %45 : i32 to index
    %c0_20 = arith.constant 0 : index
    %47 = vector.load %arg10[%c0_19, %46, %c0_20] : memref<2x16x128xf32, #tpu.memory_space<vmem>>, vector<2x11x128xf32>
    %48 = vector.extract_strided_slice %47 {offsets = [0, 0, 0], sizes = [2, 8, 128], strides = [1, 1, 1]} : vector<2x11x128xf32> to vector<2x8x128xf32>
    %49 = vector.extract_strided_slice %47 {offsets = [0, 1, 0], sizes = [2, 8, 128], strides = [1, 1, 1]} : vector<2x11x128xf32> to vector<2x8x128xf32>
    %50 = arith.addf %48, %49 : vector<2x8x128xf32>
    %51 = vector.extract_strided_slice %47 {offsets = [0, 2, 0], sizes = [2, 8, 128], strides = [1, 1, 1]} : vector<2x11x128xf32> to vector<2x8x128xf32>
    %52 = arith.addf %50, %51 : vector<2x8x128xf32>
    %53 = vector.extract_strided_slice %47 {offsets = [0, 3, 0], sizes = [2, 8, 128], strides = [1, 1, 1]} : vector<2x11x128xf32> to vector<2x8x128xf32>
    %54 = arith.addf %52, %53 : vector<2x8x128xf32>
    %55 = arith.mulf %43, %54 : vector<2x8x128xf32>
    %c0_21 = arith.constant 0 : index
    %c0_22 = arith.constant 0 : index
    %c0_23 = arith.constant 0 : index
    %56 = vector.load %arg9[%c0_21, %c0_22, %c0_23] : memref<2x8x128xf32, #tpu.memory_space<vmem>>, vector<2x8x128xf32>
    tpu.vector_store %arg9[%c0_21, %c0_22, %c0_23], %55 {strides = array<i32>} : memref<2x8x128xf32, #tpu.memory_space<vmem>>, vector<2x8x128xf32>,
    return
  }
  func.func @transform_0(%arg0: i32, %arg1: i32) -> (i32, i32, i32) {
    %c0_i32 = arith.constant 0 : i32
    %c0_i32_0 = arith.constant 0 : i32
    return %arg0, %arg1, %c0_i32 : i32, i32, i32
  }
  func.func @transform_1(%arg0: i32, %arg1: i32) -> (i32, i32, i32) {
    %c0_i32 = arith.constant 0 : i32
    %c0_i32_0 = arith.constant 0 : i32
    %c0_i32_1 = arith.constant 0 : i32
    return %arg0, %c0_i32, %c0_i32_0 : i32, i32, i32
  }
  func.func @transform_2(%arg0: i32, %arg1: i32) -> (i32, i32, i32) {
    %c0_i32 = arith.constant 0 : i32
    %c0_i32_0 = arith.constant 0 : i32
    %c0_i32_1 = arith.constant 0 : i32
    return %arg0, %c0_i32, %c0_i32_0 : i32, i32, i32
  }
  func.func @transform_3(%arg0: i32, %arg1: i32) -> (i32, i32) {
    %c0_i32 = arith.constant 0 : i32
    %c0_i32_0 = arith.constant 0 : i32
    %c0_i32_1 = arith.constant 0 : i32
    return %c0_i32, %c0_i32_0 : i32, i32
  }
  func.func @transform_4(%arg0: i32, %arg1: i32) -> (i32, i32) {
    %c0_i32 = arith.constant 0 : i32
    %c0_i32_0 = arith.constant 0 : i32
    %c0_i32_1 = arith.constant 0 : i32
    return %c0_i32, %c0_i32_0 : i32, i32
  }
  func.func @transform_5(%arg0: i32, %arg1: i32) -> (i32, i32, i32) {
    %c0_i32 = arith.constant 0 : i32
    %c0_i32_0 = arith.constant 0 : i32
    %c0_i32_1 = arith.constant 0 : i32
    %c0_i32_2 = arith.constant 0 : i32
    return %c0_i32, %c0_i32_0, %c0_i32_1 : i32, i32, i32
  }
  func.func @transform_6(%arg0: i32, %arg1: i32) -> (i32, i32) {
    %c0_i32 = arith.constant 0 : i32
    %c0_i32_0 = arith.constant 0 : i32
    %c0_i32_1 = arith.constant 0 : i32
    return %c0_i32, %c0_i32_0 : i32, i32
  }
  func.func @transform_7(%arg0: i32, %arg1: i32) -> (i32, i32, i32) {
    %c0_i32 = arith.constant 0 : i32
    %c0_i32_0 = arith.constant 0 : i32
    return %arg0, %arg1, %c0_i32 : i32, i32, i32
  }
}

</mosaic_0001>

<llo_original>
// kernel: tpu_custom_call.1
$region0: #{tpu_custom_call.1}
  #allocation0 [shape = 'u32[]', space=smem, size = 0x4, offset = 0x4, fixed_abs, tag = 'smem constant byte address 0x4 - core index']
  #allocation1 [shape = 'u32[144,128]{1,0:T(1,128)}', space=vmem, size = 0x12000, scoped, tag = 'internal scratch']
  #allocation2 [shape = 'f32[2,16,128]{2,1,0:T(8,128)}', space=vmem, size = 0x4000, scoped, tag = 'scratch operand']
  %s0 = inlined_call_operand.hbm [shape: f32[4,8,128], index: 0, kind: input, shape index: {}]
  %s1 = inlined_call_operand.hbm [shape: f32[4,16,128], index: 1, kind: input, shape index: {}]
  %s2 = inlined_call_operand.hbm [shape: f32[4,16,128], index: 2, kind: input, shape index: {}]
  %s3 = inlined_call_operand.vmem [shape: f32[3,128], index: 3, kind: input, shape index: {}]
  %s4 = inlined_call_operand.vmem [shape: f32[3,128], index: 4, kind: input, shape index: {}]
  %s5 = inlined_call_operand.hbm [shape: bf16[3,128,128], index: 5, kind: input, shape index: {}]
  %s6 = inlined_call_operand.vmem [shape: f32[3,128], index: 6, kind: input, shape index: {}]
  %s7 = inlined_call_operand.hbm [shape: f32[4,8,128], index: 7, kind: output, shape index: {}]
  %s8 = sld [smem:[#allocation0]]
  $region81: #{tpu_custom_call.1} parent=0
    _
  %s10 = ssub.s32 1, %s8
  %s11 = scalar_select 0, %s10, %s8
  $region1: #{tpu_custom_call.1} parent=0
    #allocation3 [shape = 'u8[16384]{0}', space=vmem, size = 0x4000, scoped, tag = 'input window, operand 0']
    #allocation4 [shape = 's32[2]{0}', space=sflag, size = 0x8, scoped, tag = 'scoped memory for tpu_custom_call.1']
    #allocation5 [shape = 's32[2]{0}', space=sflag, size = 0x8, scoped, tag = 'scoped memory for tpu_custom_call.1']
    #allocation6 [shape = 'u8[32768]{0}', space=vmem, size = 0x8000, scoped, tag = 'input window, operand 1']
    #allocation7 [shape = 's32[2]{0}', space=sflag, size = 0x8, scoped, tag = 'scoped memory for tpu_custom_call.1']
    #allocation8 [shape = 'u8[32768]{0}', space=vmem, size = 0x8000, scoped, tag = 'input window, operand 2']
    #allocation9 [shape = 'u8[98304]{0}', space=vmem, size = 0x18000, scoped, tag = 'input window, operand 5, single buffered']
    #allocation10 [shape = 's32[1]{0}', space=sflag, size = 0x4, scoped, tag = 'scoped memory for tpu_custom_call.1']
    #allocation11 [shape = 'u8[16384]{0}', space=vmem, size = 0x4000, scoped, tag = 'output window, operand 0']
    %12 = vsyncpa [#allocation4], 0
    %s13 = scalar_lea.sflag [#allocation4], 1
    %14 = vsyncpa %s13, 0
    %15 = vsyncpa [#allocation7], 0
    %s16 = scalar_lea.sflag [#allocation7], 1
    %17 = vsyncpa %s16, 0
    %18 = vsyncpa [#allocation10], 0
    %19 = vsyncpa [#allocation5], 0
    %s20 = scalar_lea.sflag [#allocation5], 1
    %21 = vsyncpa %s20, 0
    loop: start=0, step=1, limit=4
    $region2: #{tpu_custom_call.1} parent=1 // loop_pre_header
      _
    $region3: #{tpu_custom_call.1} parent=1 // loop_header
      %s23 = sphi 0, %s27
      %p24 = scmp.ge.s32.totalorder %s23, 4
      %s30 = sphi 0, %s42
      %s31 = sphi 0, %s38
      %s32 = sphi 0, %s30
      %s33 = sphi 0, %s31
      %s34 = sphi 0, %s32
      %s35 = sphi 0, %s33
      %s47 = sphi 0, %s49
      %s50 = sphi 0, %s47
      %s51 = sphi 0, %s50
      %s67 = sphi 0, %s51
      %s73 = sphi 0, %s75
      %s76 = sphi 0, %s73
      %s77 = sphi 0, %s76
      %s93 = sphi 0, %s77
      %s99 = sphi 0, %s101
      %s102 = sphi 0, %s99
      %s103 = sphi 0, %s102
      %s119 = sphi 0, %s103
      %s123 = sphi 0, %s123
      %s125 = sphi 0, %s123
      %s126 = sphi 0, %s125
      %s140 = sphi 0, %s126
      %s144 = sphi 0, %s144
      %s146 = sphi 0, %s144
      %s147 = sphi 0, %s146
      %s161 = sphi 0, %s147
      %s165 = sphi 0, %s165
      %s167 = sphi 0, %s165
      %s168 = sphi 0, %s167
      %s182 = sphi 0, %s168
      %s186 = sphi 0, %s186
      %s188 = sphi 0, %s186
      %s189 = sphi 0, %s188
      %s203 = sphi 0, %s189
      %s211 = sphi 0, %s213
      %s214 = sphi 0, %s211
      %s215 = sphi 0, %s214
      %s231 = sphi 0, %s215
    $region4: #{tpu_custom_call.1} parent=1 // loop_header_branch
      %26 = sbr.rel (%p24) target = $region8
    $region5: #{tpu_custom_call.1} parent=1 // loop_body
      %s28 = ssub.s32 %s23, 1
      %s29 = ssub.s32 %s23, 2
      %s36 = sadd.s32 1, %s31
      %p37 = scmp.ge.s32.totalorder %s36, 1
      %s38 = scalar_select %p37, 0, %s36
      %s39 = sadd.s32 1, %s30
      %s40 = scalar_select %p37, %s39, %s30
      %p41 = scmp.ge.s32.totalorder %s40, 2
      %s42 = scalar_select %p41, 0, %s40
      %s43 = ssub.s32 %s30, %s42
      %s44 = ssub.s32 %s31, %s38
      %s45 = sor.u32 %s43, %s44
      %p46 = scmp.eq.s32.totalorder %s45, 0
      %s48 = sadd.s32 %s47, 1
      %s49 = scalar_select %p46, %s47, %s48
      %p52 = pneg %p46
      %p53 = scmp.eq.s32.totalorder %s23, 1
      %p54 = por %p52, %p53
      %p55 = scmp.ne.s32.totalorder %s47, %s50
      %p56 = scmp.eq.s32.totalorder %s23, 0
      %p57 = por %p55, %p56
      %p58 = scmp.ne.s32.totalorder %s47, %s50
      %p59 = scmp.eq.s32.totalorder %s28, 1
      %p60 = por %p58, %p59
      %p61 = scmp.ne.s32.totalorder %s50, %s51
      %p62 = scmp.eq.s32.totalorder %s28, 0
      %p63 = por %p61, %p62
      %p64 = scmp.ne.s32.totalorder %s50, %s51
      %p65 = scmp.eq.s32.totalorder %s29, 1
      %p66 = por %p64, %p65
      %p68 = scmp.ne.s32.totalorder %s51, %s67
      %p69 = scmp.eq.s32.totalorder %s29, 0
      %p70 = por %p68, %p69
      %s71 = ssub.s32 %s30, %s42
      %p72 = scmp.eq.s32.totalorder %s71, 0
      %s74 = sadd.s32 %s73, 1
      %s75 = scalar_select %p72, %s73, %s74
      %p78 = pneg %p72
      %p79 = scmp.eq.s32.totalorder %s23, 1
      %p80 = por %p78, %p79
      %p81 = scmp.ne.s32.totalorder %s73, %s76
      %p82 = scmp.eq.s32.totalorder %s23, 0
      %p83 = por %p81, %p82
      %p84 = scmp.ne.s32.totalorder %s73, %s76
      %p85 = scmp.eq.s32.totalorder %s28, 1
      %p86 = por %p84, %p85
      %p87 = scmp.ne.s32.totalorder %s76, %s77
      %p88 = scmp.eq.s32.totalorder %s28, 0
      %p89 = por %p87, %p88
      %p90 = scmp.ne.s32.totalorder %s76, %s77
      %p91 = scmp.eq.s32.totalorder %s29, 1
      %p92 = por %p90, %p91
      %p94 = scmp.ne.s32.totalorder %s77, %s93
      %p95 = scmp.eq.s32.totalorder %s29, 0
      %p96 = por %p94, %p95
      %s97 = ssub.s32 %s30, %s42
      %p98 = scmp.eq.s32.totalorder %s97, 0
      %s100 = sadd.s32 %s99, 1
      %s101 = scalar_select %p98, %s99, %s100
      %p104 = pneg %p98
      %p105 = scmp.eq.s32.totalorder %s23, 1
      %p106 = por %p104, %p105
      %p107 = scmp.ne.s32.totalorder %s99, %s102
      %p108 = scmp.eq.s32.totalorder %s23, 0
      %p109 = por %p107, %p108
      %p110 = scmp.ne.s32.totalorder %s99, %s102
      %p111 = scmp.eq.s32.totalorder %s28, 1
      %p112 = por %p110, %p111
      %p113 = scmp.ne.s32.totalorder %s102, %s103
      %p114 = scmp.eq.s32.totalorder %s28, 0
      %p115 = por %p113, %p114
      %p116 = scmp.ne.s32.totalorder %s102, %s103
      %p117 = scmp.eq.s32.totalorder %s29, 1
      %p118 = por %p116, %p117
      %p120 = scmp.ne.s32.totalorder %s103, %s119
      %p121 = scmp.eq.s32.totalorder %s29, 0
      %p122 = por %p120, %p121
      %s124 = sadd.s32 %s123, 1
      %p127 = scmp.eq.s32.totalorder %s23, 1
      %p128 = scmp.ne.s32.totalorder %s123, %s125
      %p129 = scmp.eq.s32.totalorder %s23, 0
      %p130 = por %p128, %p129
      %p131 = scmp.ne.s32.totalorder %s123, %s125
      %p132 = scmp.eq.s32.totalorder %s28, 1
      %p133 = por %p131, %p132
      %p134 = scmp.ne.s32.totalorder %s125, %s126
      %p135 = scmp.eq.s32.totalorder %s28, 0
      %p136 = por %p134, %p135
      %p137 = scmp.ne.s32.totalorder %s125, %s126
      %p138 = scmp.eq.s32.totalorder %s29, 1
      %p139 = por %p137, %p138
      %p141 = scmp.ne.s32.totalorder %s126, %s140
      %p142 = scmp.eq.s32.totalorder %s29, 0
      %p143 = por %p141, %p142
      %s145 = sadd.s32 %s144, 1
      %p148 = scmp.eq.s32.totalorder %s23, 1
      %p149 = scmp.ne.s32.totalorder %s144, %s146
      %p150 = scmp.eq.s32.totalorder %s23, 0
      %p151 = por %p149, %p150
      %p152 = scmp.ne.s32.totalorder %s144, %s146
      %p153 = scmp.eq.s32.totalorder %s28, 1
      %p154 = por %p152, %p153
      %p155 = scmp.ne.s32.totalorder %s146, %s147
      %p156 = scmp.eq.s32.totalorder %s28, 0
      %p157 = por %p155, %p156
      %p158 = scmp.ne.s32.totalorder %s146, %s147
      %p159 = scmp.eq.s32.totalorder %s29, 1
      %p160 = por %p158, %p159
      %p162 = scmp.ne.s32.totalorder %s147, %s161
      %p163 = scmp.eq.s32.totalorder %s29, 0
      %p164 = por %p162, %p163
      %s166 = sadd.s32 %s165, 1
      %p169 = scmp.eq.s32.totalorder %s23, 1
      %p170 = scmp.ne.s32.totalorder %s165, %s167
      %p171 = scmp.eq.s32.totalorder %s23, 0
      %p172 = por %p170, %p171
      %p173 = scmp.ne.s32.totalorder %s165, %s167
      %p174 = scmp.eq.s32.totalorder %s28, 1
      %p175 = por %p173, %p174
      %p176 = scmp.ne.s32.totalorder %s167, %s168
      %p177 = scmp.eq.s32.totalorder %s28, 0
      %p178 = por %p176, %p177
      %p179 = scmp.ne.s32.totalorder %s167, %s168
      %p180 = scmp.eq.s32.totalorder %s29, 1
      %p181 = por %p179, %p180
      %p183 = scmp.ne.s32.totalorder %s168, %s182
      %p184 = scmp.eq.s32.totalorder %s29, 0
      %p185 = por %p183, %p184
      %s187 = sadd.s32 %s186, 1
      %p190 = scmp.eq.s32.totalorder %s23, 1
      %p191 = scmp.ne.s32.totalorder %s186, %s188
      %p192 = scmp.eq.s32.totalorder %s23, 0
      %p193 = por %p191, %p192
      %p194 = scmp.ne.s32.totalorder %s186, %s188
      %p195 = scmp.eq.s32.totalorder %s28, 1
      %p196 = por %p194, %p195
      %p197 = scmp.ne.s32.totalorder %s188, %s189
      %p198 = scmp.eq.s32.totalorder %s28, 0
      %p199 = por %p197, %p198
      %p200 = scmp.ne.s32.totalorder %s188, %s189
      %p201 = scmp.eq.s32.totalorder %s29, 1
      %p202 = por %p200, %p201
      %p204 = scmp.ne.s32.totalorder %s189, %s203
      %p205 = scmp.eq.s32.totalorder %s29, 0
      %p206 = por %p204, %p205
      %s207 = ssub.s32 %s30, %s42
      %s208 = ssub.s32 %s31, %s38
      %s209 = sor.u32 %s207, %s208
      %p210 = scmp.eq.s32.totalorder %s209, 0
      %s212 = sadd.s32 %s211, 1
      %s213 = scalar_select %p210, %s211, %s212
      %p216 = pneg %p210
      %p217 = scmp.eq.s32.totalorder %s23, 1
      %p218 = por %p216, %p217
      %p219 = scmp.ne.s32.totalorder %s211, %s214
      %p220 = scmp.eq.s32.totalorder %s23, 0
      %p221 = por %p219, %p220
      %p222 = scmp.ne.s32.totalorder %s211, %s214
      %p223 = scmp.eq.s32.totalorder %s28, 1
      %p224 = por %p222, %p223
      %p225 = scmp.ne.s32.totalorder %s214, %s215
      %p226 = scmp.eq.s32.totalorder %s28, 0
      %p227 = por %p225, %p226
      %p228 = scmp.ne.s32.totalorder %s214, %s215
      %p229 = scmp.eq.s32.totalorder %s29, 1
      %p230 = por %p228, %p229
      %p232 = scmp.ne.s32.totalorder %s215, %s231
      %p233 = scmp.eq.s32.totalorder %s29, 0
      %p234 = por %p232, %p233
      %p235 = scmp.le.s32.totalorder 1, %s23
      %p236 = scmp.lt.s32.totalorder %s23, 3
      %p237 = pnand %p235, %p236
      %p238 = pneg %p237
      // Predicated region
      $region9: #{tpu_custom_call.1} parent=5 // pred_check
        _
      $region10: #{tpu_custom_call.1} parent=5 // pred_check_branch
        %240 = sbr.rel (%p237) target = $region12
      $region11: #{tpu_custom_call.1} parent=5 // pred_region
        %s241 = ssub.s32 %s23, 1
        // Predicated region
        $region13: #{tpu_custom_call.1} parent=11 // pred_check
          %p242 = pneg %p136
        $region14: #{tpu_custom_call.1} parent=11 // pred_check_branch
          %244 = sbr.rel (%p242) target = $region16
        $region15: #{tpu_custom_call.1} parent=11 // pred_region
          _
        $region16: #{tpu_custom_call.1} parent=11 // pred_fallthru
          _
        // Predicated region
        $region17: #{tpu_custom_call.1} parent=11 // pred_check
          %p245 = pneg %p157
        $region18: #{tpu_custom_call.1} parent=11 // pred_check_branch
          %247 = sbr.rel (%p245) target = $region20
        $region19: #{tpu_custom_call.1} parent=11 // pred_region
          _
        $region20: #{tpu_custom_call.1} parent=11 // pred_fallthru
          _
        // Predicated region
        $region21: #{tpu_custom_call.1} parent=11 // pred_check
          %p248 = pneg %p178
        $region22: #{tpu_custom_call.1} parent=11 // pred_check_branch
          %250 = sbr.rel (%p248) target = $region24
        $region23: #{tpu_custom_call.1} parent=11 // pred_region
          %s252 = ssub.s32 3072, 3072
          %253 = vsyncadd [#allocation10], %s252
          %s254 = sshll.u32 [#allocation9], 4
          %s255 = int_to_ptr.vmem [resolvable:$true] %s254
          %260 = dma.hbm_to_vmem [thread:$0]  %s5, 3072, %s255, [#allocation10], 64, 64, 4
        $region24: #{tpu_custom_call.1} parent=11 // pred_fallthru
          _
        // Predicated region
        $region25: #{tpu_custom_call.1} parent=11 // pred_check
          %p261 = pneg %p199
        $region26: #{tpu_custom_call.1} parent=11 // pred_check_branch
          %263 = sbr.rel (%p261) target = $region28
        $region27: #{tpu_custom_call.1} parent=11 // pred_region
          _
        $region28: #{tpu_custom_call.1} parent=11 // pred_fallthru
          _
      $region12: #{tpu_custom_call.1} parent=5 // pred_fallthru
        _
      %p264 = scmp.lt.s32.totalorder %s23, 2
      // Predicated region
      $region29: #{tpu_custom_call.1} parent=5 // pred_check
        %p265 = pneg %p264
      $region30: #{tpu_custom_call.1} parent=5 // pred_check_branch
        %267 = sbr.rel (%p265) target = $region32
      $region31: #{tpu_custom_call.1} parent=5 // pred_region
        // Predicated region
        $region33: #{tpu_custom_call.1} parent=31 // pred_check
          %p268 = pneg %p57
        $region34: #{tpu_custom_call.1} parent=31 // pred_check_branch
          %270 = sbr.rel (%p268) target = $region36
        $region35: #{tpu_custom_call.1} parent=31 // pred_region
          %s271 = sand.u32 %s47, 1
          %s272 = scalar_lea.sflag [#allocation4], %s271
          %s273 = sand.u32 %s47, 1
          %s274 = smul.addr %s273, 16
          %s275 = scalar_lea.vmem [#allocation3], %s274
          %s276 = smul.u32 2, %s30
          %s278 = ssub.s32 256, 256
          %279 = vsyncadd %s272, %s278
          %s280 = sadd.s32 %s31, %s276
          %s281 = smul.addr %s280, 128
          %s282 = scalar_lea.hbm %s0, %s281
          %s283 = sshll.u32 %s275, 4
          %s284 = int_to_ptr.vmem [resolvable:$true] %s283
          %289 = dma.hbm_to_vmem [thread:$0]  %s282, 256, %s284, %s272, 128, 128, 8
        $region36: #{tpu_custom_call.1} parent=31 // pred_fallthru
          _
        // Predicated region
        $region37: #{tpu_custom_call.1} parent=31 // pred_check
          %p290 = pneg %p83
        $region38: #{tpu_custom_call.1} parent=31 // pred_check_branch
          %292 = sbr.rel (%p290) target = $region40
        $region39: #{tpu_custom_call.1} parent=31 // pred_region
          %s293 = sand.u32 %s23, 1
          %s294 = scalar_lea.sflag [#allocation7], %s293
          %s295 = sand.u32 %s73, 1
          %s296 = smul.addr %s295, 32
          %s297 = scalar_lea.vmem [#allocation6], %s296
          %s298 = smul.u32 2, %s30
          %s300 = ssub.s32 512, 512
          %301 = vsyncadd %s294, %s300
          %s302 = smul.addr %s298, 2
          %s303 = smul.addr %s302, 128
          %s304 = scalar_lea.hbm %s1, %s303
          %s305 = sshll.u32 %s297, 4
          %s306 = int_to_ptr.vmem [resolvable:$true] %s305
          %311 = dma.hbm_to_vmem [thread:$0]  %s304, 512, %s306, %s294, 128, 128, 8
        $region40: #{tpu_custom_call.1} parent=31 // pred_fallthru
          _
        // Predicated region
        $region41: #{tpu_custom_call.1} parent=31 // pred_check
          %p312 = pneg %p109
        $region42: #{tpu_custom_call.1} parent=31 // pred_check_branch
          %314 = sbr.rel (%p312) target = $region44
        $region43: #{tpu_custom_call.1} parent=31 // pred_region
          %s315 = sand.u32 %s23, 1
          %s316 = scalar_lea.sflag [#allocation7], %s315
          %s317 = sand.u32 %s99, 1
          %s318 = smul.addr %s317, 32
          %s319 = scalar_lea.vmem [#allocation8], %s318
          %s320 = smul.u32 2, %s30
          %s322 = ssub.s32 512, 512
          %323 = vsyncadd %s316, %s322
          %s324 = smul.addr %s320, 2
          %s325 = smul.addr %s324, 128
          %s326 = scalar_lea.hbm %s2, %s325
          %s327 = sshll.u32 %s319, 4
          %s328 = int_to_ptr.vmem [resolvable:$true] %s327
          %333 = dma.hbm_to_vmem [thread:$0]  %s326, 512, %s328, %s316, 128, 128, 8
        $region44: #{tpu_custom_call.1} parent=31 // pred_fallthru
          _
      $region32: #{tpu_custom_call.1} parent=5 // pred_fallthru
        _
      %p334 = scmp.le.s32.totalorder 1, %s23
      %p335 = scmp.lt.s32.totalorder %s23, 3
      %p336 = pnand %p334, %p335
      %p337 = pneg %p336
      // Predicated region
      $region45: #{tpu_custom_call.1} parent=5 // pred_check
        _
      $region46: #{tpu_custom_call.1} parent=5 // pred_check_branch
        %339 = sbr.rel (%p336) target = $region48
      $region47: #{tpu_custom_call.1} parent=5 // pred_region
        %s340 = ssub.s32 %s23, 1
        %s341 = sand.u32 %s50, 1
        %s342 = scalar_lea.sflag [#allocation4], %s341
        %s343 = sand.u32 %s50, 1
        %s344 = smul.addr %s343, 16
        %s345 = scalar_lea.vmem [#allocation3], %s344
        // Predicated region
        $region49: #{tpu_custom_call.1} parent=47 // pred_check
          %p346 = pneg %p63
        $region50: #{tpu_custom_call.1} parent=47 // pred_check_branch
          %348 = sbr.rel (%p346) target = $region52
        $region51: #{tpu_custom_call.1} parent=47 // pred_region
          %349 = dma.done %s342, 256
        $region52: #{tpu_custom_call.1} parent=47 // pred_fallthru
          _
        %s350 = sand.u32 %s28, 1
        %s351 = scalar_lea.sflag [#allocation7], %s350
        %s352 = sand.u32 %s76, 1
        %s353 = smul.addr %s352, 32
        %s354 = scalar_lea.vmem [#allocation6], %s353
        // Predicated region
        $region53: #{tpu_custom_call.1} parent=47 // pred_check
          %p355 = pneg %p89
        $region54: #{tpu_custom_call.1} parent=47 // pred_check_branch
          %357 = sbr.rel (%p355) target = $region56
        $region55: #{tpu_custom_call.1} parent=47 // pred_region
          %358 = dma.done %s351, 512
        $region56: #{tpu_custom_call.1} parent=47 // pred_fallthru
          _
        %s359 = sand.u32 %s28, 1
        %s360 = scalar_lea.sflag [#allocation7], %s359
        %s361 = sand.u32 %s102, 1
        %s362 = smul.addr %s361, 32
        %s363 = scalar_lea.vmem [#allocation8], %s362
        // Predicated region
        $region57: #{tpu_custom_call.1} parent=47 // pred_check
          %p364 = pneg %p115
        $region58: #{tpu_custom_call.1} parent=47 // pred_check_branch
          %366 = sbr.rel (%p364) target = $region60
        $region59: #{tpu_custom_call.1} parent=47 // pred_region
          %367 = dma.done %s360, 512
        $region60: #{tpu_custom_call.1} parent=47 // pred_fallthru
          _
        // Predicated region
        $region61: #{tpu_custom_call.1} parent=47 // pred_check
          %p368 = pneg %p178
        $region62: #{tpu_custom_call.1} parent=47 // pred_check_branch
          %370 = sbr.rel (%p368) target = $region64
        $region63: #{tpu_custom_call.1} parent=47 // pred_region
          %371 = dma.done [#allocation10], 3072
        $region64: #{tpu_custom_call.1} parent=47 // pred_fallthru
          _
        %s372 = sand.u32 %s50, 1
        %s373 = scalar_lea.sflag [#allocation4], %s372
        %s374 = sand.u32 %s50, 1
        %s375 = smul.addr %s374, 16
        %s376 = scalar_lea.vmem [#allocation3], %s375
        %p377 = pneg %p63
        %p378 = pneg %p60
        %s379 = sand.u32 %s28, 1
        %s380 = scalar_lea.sflag [#allocation7], %s379
        %s381 = sand.u32 %s76, 1
        %s382 = smul.addr %s381, 32
        %s383 = scalar_lea.vmem [#allocation6], %s382
        %p384 = pneg %p89
        %p385 = pneg %p86
        %s386 = sand.u32 %s28, 1
        %s387 = scalar_lea.sflag [#allocation7], %s386
        %s388 = sand.u32 %s102, 1
        %s389 = smul.addr %s388, 32
        %s390 = scalar_lea.vmem [#allocation8], %s389
        %p391 = pneg %p115
        %p392 = pneg %p112
        %p393 = pneg %p136
        %p394 = pneg %p133
        %p395 = pneg %p157
        %p396 = pneg %p154
        %p397 = pneg %p178
        %p398 = pneg %p175
        %p399 = pneg %p199
        %p400 = pneg %p196
        %p401 = pneg %p227
        %p402 = pneg %p224
        %s403 = sand.u32 %s214, 1
        %s404 = scalar_lea.sflag [#allocation5], %s403
        %s405 = sand.u32 %s214, 1
        %s406 = smul.addr %s405, 16
        %s407 = scalar_lea.vmem [#allocation11], %s406
        %s408 = smul.u32 2, %s32
        %s409 = smul.u32 2, %s32
        %s410 = smul.u32 2, %s32
        %s411 = smul.u32 2, %s32
        %v413 = vld [vmem:[%s3] sm:$0x7]
        %v414 = vld [vmem:[%s4] sm:$0x7]
        %v415 = vld [vmem:[%s6] sm:$0x7]
        %p416 = scmp.eq.s32.totalorder %s33, 0
        // Predicated region
        $region65: #{tpu_custom_call.1} parent=47 // pred_check
          %p417 = pneg %p416
        $region66: #{tpu_custom_call.1} parent=47 // pred_check_branch
          %419 = sbr.rel (%p417) target = $region68
        $region67: #{tpu_custom_call.1} parent=47 // pred_region
          %v420 = vld [vmem:[%s354] sm:$0xff]
          %v421 = vld [vmem:[%s354 + $0x8] sm:$0xff]
          %v422 = vld [vmem:[%s354 + $0x10] sm:$0xff]
          %v423 = vld [vmem:[%s354 + $0x18] sm:$0xff]
          %v424 = vld [vmem:[%s363] sm:$0xff]
          %v425 = vld [vmem:[%s363 + $0x8] sm:$0xff]
          %v426 = vld [vmem:[%s363 + $0x10] sm:$0xff]
          %v427 = vld [vmem:[%s363 + $0x18] sm:$0xff]
          %428 = vadd.xlane.f32.xlu0 %v420
          %v429 = vpop.xlane.xlu0 %428
          %430 = vadd.xlane.f32.xlu0 %v421
          %v431 = vpop.xlane.xlu0 %430
          %432 = vadd.xlane.f32.xlu0 %v422
          %v433 = vpop.xlane.xlu0 %432
          %434 = vadd.xlane.f32.xlu0 %v423
          %v435 = vpop.xlane.xlu0 %434
          %v436 = vmul.f32 %v429, 0.03125
          %v437 = vmul.f32 %v431, 0.03125
          %v438 = vmul.f32 %v433, 0.03125
          %v439 = vmul.f32 %v435, 0.03125
          %v440 = vmul.f32 %v420, %v420
          %v441 = vmul.f32 %v421, %v421
          %v442 = vmul.f32 %v422, %v422
          %v443 = vmul.f32 %v423, %v423
          %444 = vadd.xlane.f32.xlu0 %v440
          %v445 = vpop.xlane.xlu0 %444
          %446 = vadd.xlane.f32.xlu0 %v441
          %v447 = vpop.xlane.xlu0 %446
          %448 = vadd.xlane.f32.xlu0 %v442
          %v449 = vpop.xlane.xlu0 %448
          %450 = vadd.xlane.f32.xlu0 %v443
          %v451 = vpop.xlane.xlu0 %450
          %v452 = vmul.f32 %v445, 0.03125
          %v453 = vmul.f32 %v447, 0.03125
          %v454 = vmul.f32 %v449, 0.03125
          %v455 = vmul.f32 %v451, 0.03125
          %v456 = vmul.f32 %v436, %v436
          %v457 = vmul.f32 %v437, %v437
          %v458 = vmul.f32 %v438, %v438
          %v459 = vmul.f32 %v439, %v439
          %v460 = vsub.f32 %v452, %v456
          %v461 = vsub.f32 %v453, %v457
          %v462 = vsub.f32 %v454, %v458
          %v463 = vsub.f32 %v455, %v459
          %v464 = vmax.f32 %v460, 0.0
          %v465 = vmax.f32 %v461, 0.0
          %v466 = vmax.f32 %v462, 0.0
          %v467 = vmax.f32 %v463, 0.0
          %v468 = vsub.f32 %v420, %v436
          %v469 = vsub.f32 %v421, %v437
          %v470 = vsub.f32 %v422, %v438
          %v471 = vsub.f32 %v423, %v439
          %v472 = vadd.f32 %v464, 1e-05
          %v473 = vadd.f32 %v465, 1e-05
          %v474 = vadd.f32 %v466, 1e-05
          %v475 = vadd.f32 %v467, 1e-05
          %v476 = vrsqrt.pop %v472
          %v477 = vrsqrt.pop %v473
          %v478 = vrsqrt.pop %v474
          %v479 = vrsqrt.pop %v475
          %v480 = vmul.f32 %v468, %v476
          %v481 = vmul.f32 %v469, %v477
          %v482 = vmul.f32 %v470, %v478
          %v483 = vmul.f32 %v471, %v479
          %v484 = vlaneseq
          %v485 = vshrl.u32 %v484, 7
          %v486 = vsub.s32 1, %v485
          %v487 = vrot.slane %v413, %v486
          %v488 = vmul.f32 %v480, %v487
          %v489 = vmul.f32 %v481, %v487
          %v490 = vmul.f32 %v482, %v487
          %v491 = vmul.f32 %v483, %v487
          %v492 = vlaneseq
          %v493 = vshrl.u32 %v492, 7
          %v494 = vsub.s32 1, %v493
          %v495 = vrot.slane %v414, %v494
          %v496 = vadd.f32 %v488, %v495
          %v497 = vadd.f32 %v489, %v495
          %v498 = vadd.f32 %v490, %v495
          %v499 = vadd.f32 %v491, %v495
          %v500 = vpack.c.bf16 %v497, %v496
          %v501 = vpack.c.bf16 %v499, %v498
          %502 = vadd.xlane.f32.xlu0 %v424
          %v503 = vpop.xlane.xlu0 %502
          %504 = vadd.xlane.f32.xlu0 %v425
          %v505 = vpop.xlane.xlu0 %504
          %506 = vadd.xlane.f32.xlu0 %v426
          %v507 = vpop.xlane.xlu0 %506
          %508 = vadd.xlane.f32.xlu0 %v427
          %v509 = vpop.xlane.xlu0 %508
          %v510 = vmul.f32 %v503, 0.03125
          %v511 = vmul.f32 %v505, 0.03125
          %v512 = vmul.f32 %v507, 0.03125
          %v513 = vmul.f32 %v509, 0.03125
          %v514 = vmul.f32 %v424, %v424
          %v515 = vmul.f32 %v425, %v425
          %v516 = vmul.f32 %v426, %v426
          %v517 = vmul.f32 %v427, %v427
          %518 = vadd.xlane.f32.xlu0 %v514
          %v519 = vpop.xlane.xlu0 %518
          %520 = vadd.xlane.f32.xlu0 %v515
          %v521 = vpop.xlane.xlu0 %520
          %522 = vadd.xlane.f32.xlu0 %v516
          %v523 = vpop.xlane.xlu0 %522
          %524 = vadd.xlane.f32.xlu0 %v517
          %v525 = vpop.xlane.xlu0 %524
          %v526 = vmul.f32 %v519, 0.03125
          %v527 = vmul.f32 %v521, 0.03125
          %v528 = vmul.f32 %v523, 0.03125
          %v529 = vmul.f32 %v525, 0.03125
          %v530 = vmul.f32 %v510, %v510
          %v531 = vmul.f32 %v511, %v511
          %v532 = vmul.f32 %v512, %v512
          %v533 = vmul.f32 %v513, %v513
          %v534 = vsub.f32 %v526, %v530
          %v535 = vsub.f32 %v527, %v531
          %v536 = vsub.f32 %v528, %v532
          %v537 = vsub.f32 %v529, %v533
          %v538 = vmax.f32 %v534, 0.0
          %v539 = vmax.f32 %v535, 0.0
          %v540 = vmax.f32 %v536, 0.0
          %v541 = vmax.f32 %v537, 0.0
          %v542 = vsub.f32 %v424, %v510
          %v543 = vsub.f32 %v425, %v511
          %v544 = vsub.f32 %v426, %v512
          %v545 = vsub.f32 %v427, %v513
          %v546 = vadd.f32 %v538, 1e-05
          %v547 = vadd.f32 %v539, 1e-05
          %v548 = vadd.f32 %v540, 1e-05
          %v549 = vadd.f32 %v541, 1e-05
          %v550 = vrsqrt.pop %v546
          %v551 = vrsqrt.pop %v547
          %v552 = vrsqrt.pop %v548
          %v553 = vrsqrt.pop %v549
          %v554 = vmul.f32 %v542, %v550
          %v555 = vmul.f32 %v543, %v551
          %v556 = vmul.f32 %v544, %v552
          %v557 = vmul.f32 %v545, %v553
          %v558 = vlaneseq
          %v559 = vshrl.u32 %v558, 7
          %v560 = vsub.s32 2, %v559
          %v561 = vrot.slane %v413, %v560
          %v562 = vmul.f32 %v554, %v561
          %v563 = vmul.f32 %v555, %v561
          %v564 = vmul.f32 %v556, %v561
          %v565 = vmul.f32 %v557, %v561
          %v566 = vlaneseq
          %v567 = vshrl.u32 %v566, 7
          %v568 = vsub.s32 2, %v567
          %v569 = vrot.slane %v414, %v568
          %v570 = vadd.f32 %v562, %v569
          %v571 = vadd.f32 %v563, %v569
          %v572 = vadd.f32 %v564, %v569
          %v573 = vadd.f32 %v565, %v569
          %v574 = vpack.c.bf16 %v571, %v570
          %v575 = vpack.c.bf16 %v573, %v572
          %s576 = scalar_lea.vmem [#allocation9], 64
          %v577 = vld [vmem:[%s576] sm:$0xf]
          %v578 = vld [vmem:[%s576 + $0x4] sm:$0xf]
          %v579 = vld [vmem:[%s576 + $0x8] sm:$0xf]
          %v580 = vld [vmem:[%s576 + $0xc] sm:$0xf]
          %v581 = vld [vmem:[%s576 + $0x10] sm:$0xf]
          %v582 = vld [vmem:[%s576 + $0x14] sm:$0xf]
          %v583 = vld [vmem:[%s576 + $0x18] sm:$0xf]
          %v584 = vld [vmem:[%s576 + $0x1c] sm:$0xf]
          %v585 = vld [vmem:[%s576 + $0x20] sm:$0xf]
          %v586 = vld [vmem:[%s576 + $0x24] sm:$0xf]
          %v587 = vld [vmem:[%s576 + $0x28] sm:$0xf]
          %v588 = vld [vmem:[%s576 + $0x2c] sm:$0xf]
          %v589 = vld [vmem:[%s576 + $0x30] sm:$0xf]
          %v590 = vld [vmem:[%s576 + $0x34] sm:$0xf]
          %v591 = vld [vmem:[%s576 + $0x38] sm:$0xf]
          %v592 = vld [vmem:[%s576 + $0x3c] sm:$0xf]
          %v593 = vlaneseq
          %v594 = vshrl.u32 %v593, 7
          %v595 = vsub.s32 1, %v594
          %v596 = vrot.slane %v415, %v595
          %v613 = vunpack.c.l.b16 %v577
          %v614 = vunpack.c.l.b16 %v578
          %v615 = vunpack.c.l.b16 %v579
          %v616 = vunpack.c.l.b16 %v580
          %v617 = vunpack.c.l.b16 %v581
          %v618 = vunpack.c.l.b16 %v582
          %v619 = vunpack.c.l.b16 %v583
          %v620 = vunpack.c.l.b16 %v584
          %v621 = vunpack.c.l.b16 %v585
          %v622 = vunpack.c.l.b16 %v586
          %v623 = vunpack.c.l.b16 %v587
          %v624 = vunpack.c.l.b16 %v588
          %v625 = vunpack.c.l.b16 %v589
          %v626 = vunpack.c.l.b16 %v590
          %v627 = vunpack.c.l.b16 %v591
          %v628 = vunpack.c.l.b16 %v592
          %v629 = vpack.c.b16 %v614, %v613
          %v630 = vpack.c.b16 %v616, %v615
          %v631 = vpack.c.b16 %v618, %v617
          %v632 = vpack.c.b16 %v620, %v619
          %v633 = vpack.c.b16 %v622, %v621
          %v634 = vpack.c.b16 %v624, %v623
          %v635 = vpack.c.b16 %v626, %v625
          %v636 = vpack.c.b16 %v628, %v627
          %645 = vmatprep.subr.bf16.mxu0 0
          %646 = vmatpush1.bf16.msra.mxu0 %v629
          %647 = vmatprep.subr.bf16.mxu0 0
          %648 = vmatpush1.bf16.msra.mxu0 %v630
          %649 = vmatprep.subr.bf16.mxu0 0
          %650 = vmatpush1.bf16.msra.mxu0 %v631
          %651 = vmatprep.subr.bf16.mxu0 0
          %652 = vmatpush1.bf16.msra.mxu0 %v632
          %653 = vmatprep.subr.bf16.mxu0 0
          %654 = vmatpush1.bf16.msra.mxu0 %v633
          %655 = vmatprep.subr.bf16.mxu0 0
          %656 = vmatpush1.bf16.msra.mxu0 %v634
          %657 = vmatprep.subr.bf16.mxu0 0
          %658 = vmatpush1.bf16.msra.mxu0 %v635
          %659 = vmatprep.subr.bf16.mxu0 0
          %660 = vmatpush1.bf16.msra.mxu0 %v636
          %661 = vmatprep.subr.bf16.mxu0 0
          %662 = vmatpush1.bf16.msra.mxu0 0
          %663 = vmatprep.subr.bf16.mxu0 0
          %664 = vmatpush1.bf16.msra.mxu0 0
          %665 = vmatprep.subr.bf16.mxu0 0
          %666 = vmatpush1.bf16.msra.mxu0 0
          %667 = vmatprep.subr.bf16.mxu0 0
          %668 = vmatpush1.bf16.msra.mxu0 0
          %669 = vmatprep.subr.bf16.mxu0 0
          %670 = vmatpush1.bf16.msra.mxu0 0
          %671 = vmatprep.subr.bf16.mxu0 0
          %672 = vmatpush1.bf16.msra.mxu0 0
          %673 = vmatprep.subr.bf16.mxu0 0
          %674 = vmatpush1.bf16.msra.mxu0 0
          %675 = vmatprep.subr.bf16.mxu0 0
          %676 = vmatpush1.bf16.msra.mxu0 0
          %677 = vmatprep.mubr.bf16.mxu0 0
          %678 = vmatmul.mubr.bf16.gmra.mrb[0].mxu0 %v500
          %v679 = vpop.f32.mrb[0].mxu0
          %v680 = vadd.f32 %v596, %v679
          %v681 = vpop.f32.mrb[0].mxu0
          %v682 = vpop.f32.mrb[0].mxu0
          %v683 = vadd.f32 %v596, %v682
          %v684 = vpop.f32.mrb[0].mxu0
          %685 = vmatprep.mubr.bf16.mxu0 0
          %686 = vmatmul.mubr.bf16.gmra.mrb[0].mxu0 %v501
          %v687 = vpop.f32.mrb[0].mxu0
          %v688 = vadd.f32 %v596, %v687
          %v689 = vpop.f32.mrb[0].mxu0
          %v690 = vpop.f32.mrb[0].mxu0
          %v691 = vadd.f32 %v596, %v690
          %v692 = vpop.f32.mrb[0].mxu0
          %693 = vdwg.mxu0
          %s694 = scalar_lea.vmem [#allocation9], 128
          %v695 = vld [vmem:[%s694] sm:$0xf]
          %v696 = vld [vmem:[%s694 + $0x4] sm:$0xf]
          %v697 = vld [vmem:[%s694 + $0x8] sm:$0xf]
          %v698 = vld [vmem:[%s694 + $0xc] sm:$0xf]
          %v699 = vld [vmem:[%s694 + $0x10] sm:$0xf]
          %v700 = vld [vmem:[%s694 + $0x14] sm:$0xf]
          %v701 = vld [vmem:[%s694 + $0x18] sm:$0xf]
          %v702 = vld [vmem:[%s694 + $0x1c] sm:$0xf]
          %v703 = vld [vmem:[%s694 + $0x20] sm:$0xf]
          %v704 = vld [vmem:[%s694 + $0x24] sm:$0xf]
          %v705 = vld [vmem:[%s694 + $0x28] sm:$0xf]
          %v706 = vld [vmem:[%s694 + $0x2c] sm:$0xf]
          %v707 = vld [vmem:[%s694 + $0x30] sm:$0xf]
          %v708 = vld [vmem:[%s694 + $0x34] sm:$0xf]
          %v709 = vld [vmem:[%s694 + $0x38] sm:$0xf]
          %v710 = vld [vmem:[%s694 + $0x3c] sm:$0xf]
          %v711 = vlaneseq
          %v712 = vshrl.u32 %v711, 7
          %v713 = vsub.s32 2, %v712
          %v714 = vrot.slane %v415, %v713
          %v731 = vunpack.c.l.b16 %v695
          %v732 = vunpack.c.l.b16 %v696
          %v733 = vunpack.c.l.b16 %v697
          %v734 = vunpack.c.l.b16 %v698
          %v735 = vunpack.c.l.b16 %v699
          %v736 = vunpack.c.l.b16 %v700
          %v737 = vunpack.c.l.b16 %v701
          %v738 = vunpack.c.l.b16 %v702
          %v739 = vunpack.c.l.b16 %v703
          %v740 = vunpack.c.l.b16 %v704
          %v741 = vunpack.c.l.b16 %v705
          %v742 = vunpack.c.l.b16 %v706
          %v743 = vunpack.c.l.b16 %v707
          %v744 = vunpack.c.l.b16 %v708
          %v745 = vunpack.c.l.b16 %v709
          %v746 = vunpack.c.l.b16 %v710
          %v747 = vpack.c.b16 %v732, %v731
          %v748 = vpack.c.b16 %v734, %v733
          %v749 = vpack.c.b16 %v736, %v735
          %v750 = vpack.c.b16 %v738, %v737
          %v751 = vpack.c.b16 %v740, %v739
          %v752 = vpack.c.b16 %v742, %v741
          %v753 = vpack.c.b16 %v744, %v743
          %v754 = vpack.c.b16 %v746, %v745
          %763 = vmatprep.subr.bf16.mxu0 0
          %764 = vmatpush1.bf16.msra.mxu0 %v747
          %765 = vmatprep.subr.bf16.mxu0 0
          %766 = vmatpush1.bf16.msra.mxu0 %v748
          %767 = vmatprep.subr.bf16.mxu0 0
          %768 = vmatpush1.bf16.msra.mxu0 %v749
          %769 = vmatprep.subr.bf16.mxu0 0
          %770 = vmatpush1.bf16.msra.mxu0 %v750
          %771 = vmatprep.subr.bf16.mxu0 0
          %772 = vmatpush1.bf16.msra.mxu0 %v751
          %773 = vmatprep.subr.bf16.mxu0 0
          %774 = vmatpush1.bf16.msra.mxu0 %v752
          %775 = vmatprep.subr.bf16.mxu0 0
          %776 = vmatpush1.bf16.msra.mxu0 %v753
          %777 = vmatprep.subr.bf16.mxu0 0
          %778 = vmatpush1.bf16.msra.mxu0 %v754
          %779 = vmatprep.subr.bf16.mxu0 0
          %780 = vmatpush1.bf16.msra.mxu0 0
          %781 = vmatprep.subr.bf16.mxu0 0
          %782 = vmatpush1.bf16.msra.mxu0 0
          %783 = vmatprep.subr.bf16.mxu0 0
          %784 = vmatpush1.bf16.msra.mxu0 0
          %785 = vmatprep.subr.bf16.mxu0 0
          %786 = vmatpush1.bf16.msra.mxu0 0
          %787 = vmatprep.subr.bf16.mxu0 0
          %788 = vmatpush1.bf16.msra.mxu0 0
          %789 = vmatprep.subr.bf16.mxu0 0
          %790 = vmatpush1.bf16.msra.mxu0 0
          %791 = vmatprep.subr.bf16.mxu0 0
          %792 = vmatpush1.bf16.msra.mxu0 0
          %793 = vmatprep.subr.bf16.mxu0 0
          %794 = vmatpush1.bf16.msra.mxu0 0
          %795 = vmatprep.mubr.bf16.mxu0 0
          %796 = vmatmul.mubr.bf16.gmra.mrb[0].mxu0 %v574
          %v797 = vpop.f32.mrb[0].mxu0
          %v798 = vadd.f32 %v714, %v797
          %v799 = vpop.f32.mrb[0].mxu0
          %v800 = vpop.f32.mrb[0].mxu0
          %v801 = vadd.f32 %v714, %v800
          %v802 = vpop.f32.mrb[0].mxu0
          %803 = vmatprep.mubr.bf16.mxu0 0
          %804 = vmatmul.mubr.bf16.gmra.mrb[0].mxu0 %v575
          %v805 = vpop.f32.mrb[0].mxu0
          %v806 = vadd.f32 %v714, %v805
          %v807 = vpop.f32.mrb[0].mxu0
          %v808 = vpop.f32.mrb[0].mxu0
          %v809 = vadd.f32 %v714, %v808
          %v810 = vpop.f32.mrb[0].mxu0
          %811 = vdwg.mxu0
          %v812 = vmax.f32 %v680, 0.0
          %v813 = vmax.f32 %v683, 0.0
          %v814 = vmax.f32 %v688, 0.0
          %v815 = vmax.f32 %v691, 0.0
          %v816 = vmul.f32 %v812, %v798
          %v817 = vmul.f32 %v813, %v801
          %v818 = vmul.f32 %v814, %v806
          %v819 = vmul.f32 %v815, %v809
          %820 = vst [vmem:[#allocation2] sm:$0xff] %v816
          %821 = vst [vmem:[#allocation2 + $0x8] sm:$0xff] %v817
          %822 = vst [vmem:[#allocation2 + $0x10] sm:$0xff] %v818
          %823 = vst [vmem:[#allocation2 + $0x18] sm:$0xff] %v819
        $region68: #{tpu_custom_call.1} parent=47 // pred_fallthru
          _
        %v824 = vld [vmem:[%s345] sm:$0xff]
        %v825 = vld [vmem:[%s345 + $0x8] sm:$0xff]
        %826 = vadd.xlane.f32.xlu0 %v824
        %v827 = vpop.xlane.xlu0 %826
        %828 = vadd.xlane.f32.xlu0 %v825
        %v829 = vpop.xlane.xlu0 %828
        %v830 = vmul.f32 %v827, 0.03125
        %v831 = vmul.f32 %v829, 0.03125
        %v832 = vmul.f32 %v824, %v824
        %v833 = vmul.f32 %v825, %v825
        %834 = vadd.xlane.f32.xlu0 %v832
        %v835 = vpop.xlane.xlu0 %834
        %836 = vadd.xlane.f32.xlu0 %v833
        %v837 = vpop.xlane.xlu0 %836
        %v838 = vmul.f32 %v835, 0.03125
        %v839 = vmul.f32 %v837, 0.03125
        %v840 = vmul.f32 %v830, %v830
        %v841 = vmul.f32 %v831, %v831
        %v842 = vsub.f32 %v838, %v840
        %v843 = vsub.f32 %v839, %v841
        %v844 = vmax.f32 %v842, 0.0
        %v845 = vmax.f32 %v843, 0.0
        %v846 = vsub.f32 %v824, %v830
        %v847 = vsub.f32 %v825, %v831
        %v848 = vadd.f32 %v844, 1e-05
        %v849 = vadd.f32 %v845, 1e-05
        %v850 = vrsqrt.pop %v848
        %v851 = vrsqrt.pop %v849
        %v852 = vmul.f32 %v846, %v850
        %v853 = vmul.f32 %v847, %v851
        %v854 = vlaneseq
        %v855 = vshrl.u32 %v854, 7
        %v856 = vsub.s32 0, %v855
        %v857 = vrot.slane %v413, %v856
        %v858 = vmul.f32 %v852, %v857
        %v859 = vmul.f32 %v853, %v857
        %v860 = vlaneseq
        %v861 = vshrl.u32 %v860, 7
        %v862 = vsub.s32 0, %v861
        %v863 = vrot.slane %v414, %v862
        %v864 = vadd.f32 %v858, %v863
        %v865 = vadd.f32 %v859, %v863
        %v866 = vpack.c.bf16 %v865, %v864
        %v867 = vld [vmem:[#allocation9] sm:$0xf]
        %v868 = vld [vmem:[#allocation9 + $0x4] sm:$0xf]
        %v869 = vld [vmem:[#allocation9 + $0x8] sm:$0xf]
        %v870 = vld [vmem:[#allocation9 + $0xc] sm:$0xf]
        %v871 = vld [vmem:[#allocation9 + $0x10] sm:$0xf]
        %v872 = vld [vmem:[#allocation9 + $0x14] sm:$0xf]
        %v873 = vld [vmem:[#allocation9 + $0x18] sm:$0xf]
        %v874 = vld [vmem:[#allocation9 + $0x1c] sm:$0xf]
        %v875 = vld [vmem:[#allocation9 + $0x20] sm:$0xf]
        %v876 = vld [vmem:[#allocation9 + $0x24] sm:$0xf]
        %v877 = vld [vmem:[#allocation9 + $0x28] sm:$0xf]
        %v878 = vld [vmem:[#allocation9 + $0x2c] sm:$0xf]
        %v879 = vld [vmem:[#allocation9 + $0x30] sm:$0xf]
        %v880 = vld [vmem:[#allocation9 + $0x34] sm:$0xf]
        %v881 = vld [vmem:[#allocation9 + $0x38] sm:$0xf]
        %v882 = vld [vmem:[#allocation9 + $0x3c] sm:$0xf]
        %v883 = vlaneseq
        %v884 = vshrl.u32 %v883, 7
        %v885 = vsub.s32 0, %v884
        %v886 = vrot.slane %v415, %v885
        %v903 = vunpack.c.l.b16 %v867
        %v904 = vunpack.c.l.b16 %v868
        %v905 = vunpack.c.l.b16 %v869
        %v906 = vunpack.c.l.b16 %v870
        %v907 = vunpack.c.l.b16 %v871
        %v908 = vunpack.c.l.b16 %v872
        %v909 = vunpack.c.l.b16 %v873
        %v910 = vunpack.c.l.b16 %v874
        %v911 = vunpack.c.l.b16 %v875
        %v912 = vunpack.c.l.b16 %v876
        %v913 = vunpack.c.l.b16 %v877
        %v914 = vunpack.c.l.b16 %v878
        %v915 = vunpack.c.l.b16 %v879
        %v916 = vunpack.c.l.b16 %v880
        %v917 = vunpack.c.l.b16 %v881
        %v918 = vunpack.c.l.b16 %v882
        %v919 = vpack.c.b16 %v904, %v903
        %v920 = vpack.c.b16 %v906, %v905
        %v921 = vpack.c.b16 %v908, %v907
        %v922 = vpack.c.b16 %v910, %v909
        %v923 = vpack.c.b16 %v912, %v911
        %v924 = vpack.c.b16 %v914, %v913
        %v925 = vpack.c.b16 %v916, %v915
        %v926 = vpack.c.b16 %v918, %v917
        %935 = vmatprep.subr.bf16.mxu0 0
        %936 = vmatpush1.bf16.msra.mxu0 %v919
        %937 = vmatprep.subr.bf16.mxu0 0
        %938 = vmatpush1.bf16.msra.mxu0 %v920
        %939 = vmatprep.subr.bf16.mxu0 0
        %940 = vmatpush1.bf16.msra.mxu0 %v921
        %941 = vmatprep.subr.bf16.mxu0 0
        %942 = vmatpush1.bf16.msra.mxu0 %v922
        %943 = vmatprep.subr.bf16.mxu0 0
        %944 = vmatpush1.bf16.msra.mxu0 %v923
        %945 = vmatprep.subr.bf16.mxu0 0
        %946 = vmatpush1.bf16.msra.mxu0 %v924
        %947 = vmatprep.subr.bf16.mxu0 0
        %948 = vmatpush1.bf16.msra.mxu0 %v925
        %949 = vmatprep.subr.bf16.mxu0 0
        %950 = vmatpush1.bf16.msra.mxu0 %v926
        %951 = vmatprep.subr.bf16.mxu0 0
        %952 = vmatpush1.bf16.msra.mxu0 0
        %953 = vmatprep.subr.bf16.mxu0 0
        %954 = vmatpush1.bf16.msra.mxu0 0
        %955 = vmatprep.subr.bf16.mxu0 0
        %956 = vmatpush1.bf16.msra.mxu0 0
        %957 = vmatprep.subr.bf16.mxu0 0
        %958 = vmatpush1.bf16.msra.mxu0 0
        %959 = vmatprep.subr.bf16.mxu0 0
        %960 = vmatpush1.bf16.msra.mxu0 0
        %961 = vmatprep.subr.bf16.mxu0 0
        %962 = vmatpush1.bf16.msra.mxu0 0
        %963 = vmatprep.subr.bf16.mxu0 0
        %964 = vmatpush1.bf16.msra.mxu0 0
        %965 = vmatprep.subr.bf16.mxu0 0
        %966 = vmatpush1.bf16.msra.mxu0 0
        %967 = vmatprep.mubr.bf16.mxu0 0
        %968 = vmatmul.mubr.bf16.gmra.mrb[0].mxu0 %v866
        %v969 = vpop.f32.mrb[0].mxu0
        %v970 = vadd.f32 %v886, %v969
        %v971 = vpop.f32.mrb[0].mxu0
        %v972 = vpop.f32.mrb[0].mxu0
        %v973 = vadd.f32 %v886, %v972
        %v974 = vpop.f32.mrb[0].mxu0
        %975 = vdwg.mxu0
        %v976 = vmax.f32 %v970, 0.0
        %v977 = vmax.f32 %v973, 0.0
        %s978 = smul.u32 %s33, 8
        %s979 = sadd.s32 %s978, 5
        %s980 = scalar_lea.vmem [#allocation2], %s979
        %v981 = vld [vmem:[%s980] sm:$0xff]
        %v982 = vld [vmem:[%s980 + $0x8] sm:$0x7]
        %v983 = vld [vmem:[%s980 + $0x10] sm:$0xff]
        %v984 = vld [vmem:[%s980 + $0x18] sm:$0x7]
        %vm989 = vcmask 1046528
        %v990 = vrot.slane %v981, 1
        %v991 = vrot.slane %v982, 1
        %v992 = vsel %vm989, %v990, %v991
        %v993 = vrot.slane %v983, 1
        %v994 = vrot.slane %v984, 1
        %v995 = vsel %vm989, %v993, %v994
        %v998 = vadd.f32 %v981, %v992
        %v999 = vadd.f32 %v983, %v995
        %vm1000 = vcmask 1045504
        %v1001 = vrot.slane %v981, 2
        %v1002 = vrot.slane %v982, 2
        %v1003 = vsel %vm1000, %v1001, %v1002
        %v1004 = vrot.slane %v983, 2
        %v1005 = vrot.slane %v984, 2
        %v1006 = vsel %vm1000, %v1004, %v1005
        %v1009 = vadd.f32 %v998, %v1003
        %v1010 = vadd.f32 %v999, %v1006
        %vm1011 = vcmask 1044480
        %v1012 = vrot.slane %v981, 3
        %v1013 = vrot.slane %v982, 3
        %v1014 = vsel %vm1011, %v1012, %v1013
        %v1015 = vrot.slane %v983, 3
        %v1016 = vrot.slane %v984, 3
        %v1017 = vsel %vm1011, %v1015, %v1016
        %v1020 = vadd.f32 %v1009, %v1014
        %v1021 = vadd.f32 %v1010, %v1017
        %v1022 = vmul.f32 %v976, %v1020
        %v1023 = vmul.f32 %v977, %v1021
        %1024 = vst [vmem:[%s407] sm:$0xff] %v1022
        %1025 = vst [vmem:[%s407 + $0x8] sm:$0xff] %v1023
        %s1026 = sand.u32 %s214, 1
        %s1027 = scalar_lea.sflag [#allocation5], %s1026
        %s1028 = sand.u32 %s214, 1
        %s1029 = smul.addr %s1028, 16
        %s1030 = scalar_lea.vmem [#allocation11], %s1029
        // Predicated region
        $region69: #{tpu_custom_call.1} parent=47 // pred_check
          %p1031 = pneg %p224
        $region70: #{tpu_custom_call.1} parent=47 // pred_check_branch
          %1033 = sbr.rel (%p1031) target = $region72
        $region71: #{tpu_custom_call.1} parent=47 // pred_region
          %s1034 = smul.u32 2, %s32
          %s1036 = ssub.s32 256, 256
          %1037 = vsyncadd %s1027, %s1036
          %s1038 = sadd.s32 %s33, %s1034
          %s1039 = smul.addr %s1038, 128
          %s1040 = scalar_lea.hbm %s7, %s1039
          %s1041 = sshll.u32 %s1030, 4
          %s1042 = int_to_ptr.vmem [resolvable:$true] %s1041
          %1047 = dma.vmem_to_hbm [thread:$0]  %s1042, 256, %s1040, %s1027, 128, 128, 8
        $region72: #{tpu_custom_call.1} parent=47 // pred_fallthru
          _
      $region48: #{tpu_custom_call.1} parent=5 // pred_fallthru
        _
      %p1048 = scmp.le.s32.totalorder 2, %s23
      // Predicated region
      $region73: #{tpu_custom_call.1} parent=5 // pred_check
        %p1049 = pneg %p1048
      $region74: #{tpu_custom_call.1} parent=5 // pred_check_branch
        %1051 = sbr.rel (%p1049) target = $region76
      $region75: #{tpu_custom_call.1} parent=5 // pred_region
        %s1052 = ssub.s32 %s23, 2
        // Predicated region
        $region77: #{tpu_custom_call.1} parent=75 // pred_check
          %p1053 = pneg %p230
        $region78: #{tpu_custom_call.1} parent=75 // pred_check_branch
          %1055 = sbr.rel (%p1053) target = $region80
        $region79: #{tpu_custom_call.1} parent=75 // pred_region
          %s1056 = sand.u32 %s215, 1
          %s1057 = scalar_lea.sflag [#allocation5], %s1056
          %s1058 = sand.u32 %s215, 1
          %s1059 = smul.addr %s1058, 16
          %s1060 = scalar_lea.vmem [#allocation11], %s1059
          %1061 = dma.done %s1057, 256
        $region80: #{tpu_custom_call.1} parent=75 // pred_fallthru
          _
      $region76: #{tpu_custom_call.1} parent=5 // pred_fallthru
        _
    $region6: #{tpu_custom_call.1} parent=1 // loop_footer
      %s27 = sadd.s32 1, %s23
    $region7: #{tpu_custom_call.1} parent=1 // loop_footer_branch
      %22 = sbr.rel target = $region3
    $region8: #{tpu_custom_call.1} parent=1 // loop_exit
      _
    %1062 = vsyncpa [#allocation4], 1
    %s1063 = scalar_lea.sflag [#allocation4], 1
    %1064 = vsyncpa %s1063, 1
    %1065 = vsyncpa [#allocation7], 1
    %s1066 = scalar_lea.sflag [#allocation7], 1
    %1067 = vsyncpa %s1066, 1
    %1068 = vsyncpa [#allocation10], 1
    %1069 = vsyncpa [#allocation5], 1
    %s1070 = scalar_lea.sflag [#allocation5], 1
    %1071 = vsyncpa %s1070, 1

</llo_original>
